<compile_context>
chip_gen: v6e
topology: v6e:2x2x1
jax: 0.10.0
libtpu: 0.0.40
codegen_flags: <defaults>
</compile_context>

<pallas_src>
import jax
import jax.numpy as jnp
from jax import lax
from jax.experimental import pallas as pl
from jax.experimental.pallas import tpu as pltpu


# ----------------------------- Pallas kernel ---------------------------------

def _make_kernel(N, bf, H, W):
    """Fused InvertedResidual (stride=1) kernel; batch folded into the sublane dim."""
    C = 2 * bf
    NB = N * bf
    HW = H * W
    f32 = jnp.float32

    # Column offsets inside the packed weight tile (NB, 2*NB + 12):
    #   [ W1_blockdiag | W3_blockdiag | dw3x3 (9) | b1 b2 b3 ]
    c_w1 = 0
    c_w3 = NB
    c_dw = 2 * NB
    c_b = 2 * NB + 9

    def kernel(x_ref, w_ref, out_ref):
        # ---- hoisted loads (single dense tile loads, sliced as register values) ------
        xa = x_ref[...].astype(f32)          # (N*C, HW)   full input
        wv = w_ref[...]                      # (NB, 2*NB+12) packed, BN scales folded in

        b1 = wv[:, c_b + 0:c_b + 1]
        b2 = wv[:, c_b + 1:c_b + 2]
        b3 = wv[:, c_b + 2:c_b + 3]

        # ---- pw conv 1 (+ folded BN1) + ReLU ------------------------------------------
        # Folded channel i -> input row (i//bf)*C + bf + i%bf (branch2 half of batch i//bf).
        # Block-diagonal weight columns keep the batch blocks independent.
        def x2_row(i):
            r = (i // bf) * C + bf + (i % bf)
            return xa[r:r + 1, :]

        acc = wv[:, c_w1:c_w1 + 1] * x2_row(0)
        for i in range(1, NB):
            acc = acc + wv[:, c_w1 + i:c_w1 + i + 1] * x2_row(i)
        y = jnp.maximum(acc + b1, 0.0)                     # (NB, HW)

        # ---- depthwise 3x3, stride 1, pad 1 (+ folded BN2, no ReLU) --------------------
        # Flat-layout neighbours via lane rolls; pre-combined iota masks do the zero pad.
        pos = lax.broadcasted_iota(jnp.int32, (1, HW), 1)
        if (W & (W - 1)) == 0:
            col = jnp.bitwise_and(pos, W - 1)
        else:
            col = pos % W
        m_top = (pos >= W).astype(f32)        # h-1 valid
        m_bot = (pos < HW - W).astype(f32)    # h+1 valid
        m_left = (col >= 1).astype(f32)       # w-1 valid
        m_right = (col <= W - 2).astype(f32)  # w+1 valid
        tap_mask = {
            (-1, -1): m_top * m_left, (-1, 0): m_top, (-1, 1): m_top * m_right,
            (0, -1): m_left,                            (0, 1): m_right,
            (1, -1): m_bot * m_left,  (1, 0): m_bot,  (1, 1): m_bot * m_right,
        }

        acc = y * wv[:, c_dw + 4:c_dw + 5]                 # centre tap (no mask needed)
        for dh in (-1, 0, 1):
            for dw in (-1, 0, 1):
                if dh == 0 and dw == 0:
                    continue
                off = dh * W + dw
                # t[:, p] == y[:, p + off]; wrapped lanes are zeroed by the mask.
                t = pltpu.roll(y, shift=(-off) % HW, axis=1)
                t = t * tap_mask[(dh, dw)]
                j = (dh + 1) * 3 + (dw + 1)
                acc = acc + t * wv[:, c_dw + j:c_dw + j + 1]
        z = acc + b2                                       # BN2 bias, no ReLU

        # ---- pw conv 2 (+ folded BN3) + ReLU ------------------------------------------
        acc = wv[:, c_w3:c_w3 + 1] * z[0:1, :]
        for i in range(1, NB):
            acc = acc + wv[:, c_w3 + i:c_w3 + i + 1] * z[i:i + 1, :]
        o = jnp.maximum(acc + b3, 0.0)                     # (NB, HW)

        # ---- fused concat + channel_shuffle(groups=2) ----------------------------------
        # shuffled channel 2*c   = x1[c]  (passthrough half)
        # shuffled channel 2*c+1 = branch2(x2)[c]
        for k in range(NB):
            n, c = divmod(k, bf)
            out_ref[n * C + 2 * c:n * C + 2 * c + 1, :] = (
                xa[n * C + c:n * C + c + 1, :].astype(out_ref.dtype))
            out_ref[n * C + 2 * c + 1:n * C + 2 * c + 2, :] = (
                o[k:k + 1, :].astype(out_ref.dtype))

    return kernel


def inverted_residual_forward(x, folded):
    """Fused stride=1 InvertedResidual forward (eval-mode BN folded into weights)."""
    N, C, H, W = x.shape
    bf = C // 2
    NB = N * bf
    HW = H * W
    w1f, dwk_f, w3f, bias = folded          # (bf,bf), (bf,9), (bf,bf), (bf,3)

    # Pre-tile / block-diagonalize the weights along the folded (batch*channel) axis and
    # pack everything into ONE array -> one BlockSpec / one DMA.
    eye = jnp.eye(N, dtype=jnp.float32)
    packed = jnp.concatenate([
        jnp.kron(eye, w1f),                 # (NB, NB)  pw conv 1, block diagonal
        jnp.kron(eye, w3f),                 # (NB, NB)  pw conv 2, block diagonal
        jnp.tile(dwk_f, (N, 1)),            # (NB, 9)   dw 3x3, per-channel, batch-tiled
        jnp.tile(bias, (N, 1)),             # (NB, 3)   b1 | b2 | b3, batch-tiled
    ], axis=1)                              # (NB, 2*NB + 12)

    x_flat = x.reshape(N * C, HW)           # lane-dense layout (last dim = 256)

    out_flat = pl.pallas_call(
        _make_kernel(N, bf, H, W),
        out_shape=jax.ShapeDtypeStruct((N * C, HW), x.dtype),
        grid=(1,),                          # single step: whole problem is one tile
        in_specs=[
            pl.BlockSpec((N * C, HW), lambda i: (0, 0)),
            pl.BlockSpec((NB, 2 * NB + 12), lambda i: (0, 0)),
        ],
        out_specs=pl.BlockSpec((N * C, HW), lambda i: (0, 0)),
        compiler_params=pltpu.CompilerParams(dimension_semantics=("arbitrary",)),
    )(x_flat, packed)

    return out_flat.reshape(N, C, H, W)


# ------------------------- reference (plain JAX) ------------------------------

def channel_shuffle(x, groups):
    N, C, H, W = x.shape
    x = x.reshape(N, groups, C // groups, H, W)
    x = jnp.transpose(x, (0, 2, 1, 3, 4))
    return x.reshape(N, C, H, W)


def _conv1x1(x, w):  # w: (Cout, Cin)
    return lax.conv_general_dilated(
        x, w[:, :, None, None], (1, 1), 'VALID',
        dimension_numbers=('NCHW', 'OIHW', 'NCHW'))


def _dwconv3x3(x, k):  # k: (C, 3, 3)
    C = x.shape[1]
    return lax.conv_general_dilated(
        x, k[:, None, :, :], (1, 1), ((1, 1), (1, 1)),
        dimension_numbers=('NCHW', 'OIHW', 'NCHW'), feature_group_count=C)


def _bn(x, gamma, beta, mean, var, eps=1e-5):
    b = lambda v: v[None, :, None, None]
    return (x - b(mean)) / jnp.sqrt(b(var) + eps) * b(gamma) + b(beta)


def inverted_residual_ref(x, raw):
    (w1, bn1, dwk, bn2, w3, bn3) = raw
    C = x.shape[1]
    bf = C // 2
    x1, x2 = x[:, :bf], x[:, bf:]
    y = jax.nn.relu(_bn(_conv1x1(x2, w1), *bn1))
    y = _bn(_dwconv3x3(y, dwk), *bn2)
    y = jax.nn.relu(_bn(_conv1x1(y, w3), *bn3))
    out = jnp.concatenate([x1, y], axis=1)
    return channel_shuffle(out, 2)


# ------------------------------ param setup -----------------------------------

def make_params(key, bf):
    ks = jax.random.split(key, 15)

    def bn_params(k0, k1, k2, k3):
        gamma = jax.random.uniform(k0, (bf,), jnp.float32, 0.5, 1.5)
        beta = 0.1 * jax.random.normal(k1, (bf,), jnp.float32)
        mean = 0.1 * jax.random.normal(k2, (bf,), jnp.float32)
        var = jax.random.uniform(k3, (bf,), jnp.float32, 0.5, 1.5)
        return gamma, beta, mean, var

    w1 = 0.2 * jax.random.normal(ks[0], (bf, bf), jnp.float32)
    bn1 = bn_params(ks[1], ks[2], ks[3], ks[4])
    dwk = 0.2 * jax.random.normal(ks[5], (bf, 3, 3), jnp.float32)
    bn2 = bn_params(ks[6], ks[7], ks[8], ks[9])
    w3 = 0.2 * jax.random.normal(ks[10], (bf, bf), jnp.float32)
    bn3 = bn_params(ks[11], ks[12], ks[13], ks[14])
    raw = (w1, bn1, dwk, bn2, w3, bn3)

    def fold(bn, eps=1e-5):
        gamma, beta, mean, var = bn
        scale = gamma / jnp.sqrt(var + eps)
        return scale, beta - mean * scale

    s1, b1 = fold(bn1)
    s2, b2 = fold(bn2)
    s3, b3 = fold(bn3)
    folded = (
        w1 * s1[:, None],                            # BN1 scale folded into pw conv 1
        (dwk * s2[:, None, None]).reshape(bf, 9),    # BN2 scale folded into dw conv
        w3 * s3[:, None],                            # BN3 scale folded into pw conv 2
        jnp.stack([b1, b2, b3], axis=1),             # packed per-channel biases (bf, 3)
    )
    return raw, folded


# --------------------------------- main ---------------------------------------

if __name__ == "__main__":
    key = jax.random.PRNGKey(0)
    k_x, k_p = jax.random.split(key)

    N, inp, H, W = 2, 8, 16, 16          # oup == inp for the stride=1 ShuffleNetV2 block
    oup = inp
    bf = oup // 2

    x = jax.random.normal(k_x, (N, inp, H, W), jnp.float32)
    raw, folded = make_params(k_p, bf)

    out = jax.jit(inverted_residual_forward)(x, folded)
    out = jax.block_until_ready(out)

    ref = inverted_residual_ref(x, raw)
    assert out.shape == (N, oup, H, W), out.shape
    err = float(jnp.max(jnp.abs(out - ref)))
    assert jnp.allclose(out, ref, rtol=1e-4, atol=1e-4), err

    print("KERNEL_OK")
</pallas_src>

<mosaic_0001>
module attributes {stable_mosaic.version = 11 : i64} {
  func.func @kernel(%arg0: i32, %arg1: memref<16x256xf32, #tpu.memory_space<vmem>>, %arg2: memref<8x28xf32, #tpu.memory_space<vmem>>, %arg3: memref<16x256xf32, #tpu.memory_space<vmem>>) attributes {dimension_semantics = [#tpu.dimension_semantics<arbitrary>], iteration_bounds = array<i64: 1>, scalar_prefetch = 0 : i64, scratch_operands = 0 : i64, tpu.core_type = #tpu.core_type<tc>, window_params = [{pipeline_mode = #tpu.pipeline_mode<synchronous>, transform_indices = @transform_0, window_bounds = array<i64: 16, 256>}, {pipeline_mode = #tpu.pipeline_mode<synchronous>, transform_indices = @transform_1, window_bounds = array<i64: 8, 28>}, {pipeline_mode = #tpu.pipeline_mode<synchronous>, transform_indices = @transform_2, window_bounds = array<i64: 16, 256>}]} {
    %c0 = arith.constant 0 : index
    %c0_0 = arith.constant 0 : index
    %0 = vector.load %arg1[%c0, %c0_0] : memref<16x256xf32, #tpu.memory_space<vmem>>, vector<16x256xf32>
    %c0_1 = arith.constant 0 : index
    %c0_2 = arith.constant 0 : index
    %1 = vector.load %arg2[%c0_1, %c0_2] : memref<8x28xf32, #tpu.memory_space<vmem>>, vector<8x28xf32>
    %2 = vector.extract_strided_slice %1 {offsets = [0, 25], sizes = [8, 1], strides = [1, 1]} : vector<8x28xf32> to vector<8x1xf32>
    %3 = vector.extract_strided_slice %1 {offsets = [0, 26], sizes = [8, 1], strides = [1, 1]} : vector<8x28xf32> to vector<8x1xf32>
    %4 = vector.extract_strided_slice %1 {offsets = [0, 27], sizes = [8, 1], strides = [1, 1]} : vector<8x28xf32> to vector<8x1xf32>
    %5 = vector.extract_strided_slice %1 {offsets = [0, 0], sizes = [8, 1], strides = [1, 1]} : vector<8x28xf32> to vector<8x1xf32>
    %6 = vector.extract_strided_slice %0 {offsets = [4, 0], sizes = [1, 256], strides = [1, 1]} : vector<16x256xf32> to vector<1x256xf32>
    %7 = vector.broadcast %5 : vector<8x1xf32> to vector<8x256xf32>
    %8 = vector.broadcast %6 : vector<1x256xf32> to vector<8x256xf32>
    %9 = arith.mulf %7, %8 : vector<8x256xf32>
    %10 = vector.extract_strided_slice %1 {offsets = [0, 1], sizes = [8, 1], strides = [1, 1]} : vector<8x28xf32> to vector<8x1xf32>
    %11 = vector.extract_strided_slice %0 {offsets = [5, 0], sizes = [1, 256], strides = [1, 1]} : vector<16x256xf32> to vector<1x256xf32>
    %12 = vector.broadcast %10 : vector<8x1xf32> to vector<8x256xf32>
    %13 = vector.broadcast %11 : vector<1x256xf32> to vector<8x256xf32>
    %14 = arith.mulf %12, %13 : vector<8x256xf32>
    %15 = arith.addf %9, %14 : vector<8x256xf32>
    %16 = vector.extract_strided_slice %1 {offsets = [0, 2], sizes = [8, 1], strides = [1, 1]} : vector<8x28xf32> to vector<8x1xf32>
    %17 = vector.extract_strided_slice %0 {offsets = [6, 0], sizes = [1, 256], strides = [1, 1]} : vector<16x256xf32> to vector<1x256xf32>
    %18 = vector.broadcast %16 : vector<8x1xf32> to vector<8x256xf32>
    %19 = vector.broadcast %17 : vector<1x256xf32> to vector<8x256xf32>
    %20 = arith.mulf %18, %19 : vector<8x256xf32>
    %21 = arith.addf %15, %20 : vector<8x256xf32>
    %22 = vector.extract_strided_slice %1 {offsets = [0, 3], sizes = [8, 1], strides = [1, 1]} : vector<8x28xf32> to vector<8x1xf32>
    %23 = vector.extract_strided_slice %0 {offsets = [7, 0], sizes = [1, 256], strides = [1, 1]} : vector<16x256xf32> to vector<1x256xf32>
    %24 = vector.broadcast %22 : vector<8x1xf32> to vector<8x256xf32>
    %25 = vector.broadcast %23 : vector<1x256xf32> to vector<8x256xf32>
    %26 = arith.mulf %24, %25 : vector<8x256xf32>
    %27 = arith.addf %21, %26 : vector<8x256xf32>
    %28 = vector.extract_strided_slice %1 {offsets = [0, 4], sizes = [8, 1], strides = [1, 1]} : vector<8x28xf32> to vector<8x1xf32>
    %29 = vector.extract_strided_slice %0 {offsets = [12, 0], sizes = [1, 256], strides = [1, 1]} : vector<16x256xf32> to vector<1x256xf32>
    %30 = vector.broadcast %28 : vector<8x1xf32> to vector<8x256xf32>
    %31 = vector.broadcast %29 : vector<1x256xf32> to vector<8x256xf32>
    %32 = arith.mulf %30, %31 : vector<8x256xf32>
    %33 = arith.addf %27, %32 : vector<8x256xf32>
    %34 = vector.extract_strided_slice %1 {offsets = [0, 5], sizes = [8, 1], strides = [1, 1]} : vector<8x28xf32> to vector<8x1xf32>
    %35 = vector.extract_strided_slice %0 {offsets = [13, 0], sizes = [1, 256], strides = [1, 1]} : vector<16x256xf32> to vector<1x256xf32>
    %36 = vector.broadcast %34 : vector<8x1xf32> to vector<8x256xf32>
    %37 = vector.broadcast %35 : vector<1x256xf32> to vector<8x256xf32>
    %38 = arith.mulf %36, %37 : vector<8x256xf32>
    %39 = arith.addf %33, %38 : vector<8x256xf32>
    %40 = vector.extract_strided_slice %1 {offsets = [0, 6], sizes = [8, 1], strides = [1, 1]} : vector<8x28xf32> to vector<8x1xf32>
    %41 = vector.extract_strided_slice %0 {offsets = [14, 0], sizes = [1, 256], strides = [1, 1]} : vector<16x256xf32> to vector<1x256xf32>
    %42 = vector.broadcast %40 : vector<8x1xf32> to vector<8x256xf32>
    %43 = vector.broadcast %41 : vector<1x256xf32> to vector<8x256xf32>
    %44 = arith.mulf %42, %43 : vector<8x256xf32>
    %45 = arith.addf %39, %44 : vector<8x256xf32>
    %46 = vector.extract_strided_slice %1 {offsets = [0, 7], sizes = [8, 1], strides = [1, 1]} : vector<8x28xf32> to vector<8x1xf32>
    %47 = vector.extract_strided_slice %0 {offsets = [15, 0], sizes = [1, 256], strides = [1, 1]} : vector<16x256xf32> to vector<1x256xf32>
    %48 = vector.broadcast %46 : vector<8x1xf32> to vector<8x256xf32>
    %49 = vector.broadcast %47 : vector<1x256xf32> to vector<8x256xf32>
    %50 = arith.mulf %48, %49 : vector<8x256xf32>
    %51 = arith.addf %45, %50 : vector<8x256xf32>
    %52 = vector.broadcast %2 : vector<8x1xf32> to vector<8x256xf32>
    %53 = arith.addf %51, %52 : vector<8x256xf32>
    %cst = arith.constant 0.000000e+00 : f32
    %54 = vector.broadcast %cst : f32 to vector<8x256xf32>
    %55 = arith.maximumf %53, %54 : vector<8x256xf32>
    %56 = tpu.iota {dimensions = array<i32: 1>} : vector<1x256xi32>
    %c15_i32 = arith.constant 15 : i32
    %57 = vector.broadcast %c15_i32 : i32 to vector<1x256xi32>
    %58 = arith.andi %56, %57 : vector<1x256xi32>
    %c16_i32 = arith.constant 16 : i32
    %59 = vector.broadcast %c16_i32 : i32 to vector<1x256xi32>
    %60 = arith.cmpi sge, %56, %59 : vector<1x256xi32>
    %61 = arith.extui %60 : vector<1x256xi1> to vector<1x256xi32>
    %62 = arith.sitofp %61 : vector<1x256xi32> to vector<1x256xf32>
    %c240_i32 = arith.constant 240 : i32
    %63 = vector.broadcast %c240_i32 : i32 to vector<1x256xi32>
    %64 = arith.cmpi slt, %56, %63 : vector<1x256xi32>
    %65 = arith.extui %64 : vector<1x256xi1> to vector<1x256xi32>
    %66 = arith.sitofp %65 : vector<1x256xi32> to vector<1x256xf32>
    %c1_i32 = arith.constant 1 : i32
    %67 = vector.broadcast %c1_i32 : i32 to vector<1x256xi32>
    %68 = arith.cmpi sge, %58, %67 : vector<1x256xi32>
    %69 = arith.extui %68 : vector<1x256xi1> to vector<1x256xi32>
    %70 = arith.sitofp %69 : vector<1x256xi32> to vector<1x256xf32>
    %c14_i32 = arith.constant 14 : i32
    %71 = vector.broadcast %c14_i32 : i32 to vector<1x256xi32>
    %72 = arith.cmpi sle, %58, %71 : vector<1x256xi32>
    %73 = arith.extui %72 : vector<1x256xi1> to vector<1x256xi32>
    %74 = arith.sitofp %73 : vector<1x256xi32> to vector<1x256xf32>
    %75 = arith.mulf %62, %70 : vector<1x256xf32>
    %76 = arith.mulf %62, %74 : vector<1x256xf32>
    %77 = arith.mulf %66, %70 : vector<1x256xf32>
    %78 = arith.mulf %66, %74 : vector<1x256xf32>
    %79 = vector.extract_strided_slice %1 {offsets = [0, 20], sizes = [8, 1], strides = [1, 1]} : vector<8x28xf32> to vector<8x1xf32>
    %80 = vector.broadcast %79 : vector<8x1xf32> to vector<8x256xf32>
    %81 = arith.mulf %55, %80 : vector<8x256xf32>
    %c17_i32 = arith.constant 17 : i32
    %82 = tpu.dynamic_rotate %55 by %c17_i32 dim 1 : vector<8x256xf32>, i32 -> vector<8x256xf32>
    %83 = vector.broadcast %75 : vector<1x256xf32> to vector<8x256xf32>
    %84 = arith.mulf %82, %83 : vector<8x256xf32>
    %85 = vector.extract_strided_slice %1 {offsets = [0, 16], sizes = [8, 1], strides = [1, 1]} : vector<8x28xf32> to vector<8x1xf32>
    %86 = vector.broadcast %85 : vector<8x1xf32> to vector<8x256xf32>
    %87 = arith.mulf %84, %86 : vector<8x256xf32>
    %88 = arith.addf %81, %87 : vector<8x256xf32>
    %c16_i32_3 = arith.constant 16 : i32
    %89 = tpu.dynamic_rotate %55 by %c16_i32_3 dim 1 : vector<8x256xf32>, i32 -> vector<8x256xf32>
    %90 = vector.broadcast %62 : vector<1x256xf32> to vector<8x256xf32>
    %91 = arith.mulf %89, %90 : vector<8x256xf32>
    %92 = vector.extract_strided_slice %1 {offsets = [0, 17], sizes = [8, 1], strides = [1, 1]} : vector<8x28xf32> to vector<8x1xf32>
    %93 = vector.broadcast %92 : vector<8x1xf32> to vector<8x256xf32>
    %94 = arith.mulf %91, %93 : vector<8x256xf32>
    %95 = arith.addf %88, %94 : vector<8x256xf32>
    %c15_i32_4 = arith.constant 15 : i32
    %96 = tpu.dynamic_rotate %55 by %c15_i32_4 dim 1 : vector<8x256xf32>, i32 -> vector<8x256xf32>
    %97 = vector.broadcast %76 : vector<1x256xf32> to vector<8x256xf32>
    %98 = arith.mulf %96, %97 : vector<8x256xf32>
    %99 = vector.extract_strided_slice %1 {offsets = [0, 18], sizes = [8, 1], strides = [1, 1]} : vector<8x28xf32> to vector<8x1xf32>
    %100 = vector.broadcast %99 : vector<8x1xf32> to vector<8x256xf32>
    %101 = arith.mulf %98, %100 : vector<8x256xf32>
    %102 = arith.addf %95, %101 : vector<8x256xf32>
    %c1_i32_5 = arith.constant 1 : i32
    %103 = tpu.dynamic_rotate %55 by %c1_i32_5 dim 1 : vector<8x256xf32>, i32 -> vector<8x256xf32>
    %104 = vector.broadcast %70 : vector<1x256xf32> to vector<8x256xf32>
    %105 = arith.mulf %103, %104 : vector<8x256xf32>
    %106 = vector.extract_strided_slice %1 {offsets = [0, 19], sizes = [8, 1], strides = [1, 1]} : vector<8x28xf32> to vector<8x1xf32>
    %107 = vector.broadcast %106 : vector<8x1xf32> to vector<8x256xf32>
    %108 = arith.mulf %105, %107 : vector<8x256xf32>
    %109 = arith.addf %102, %108 : vector<8x256xf32>
    %c255_i32 = arith.constant 255 : i32
    %110 = tpu.dynamic_rotate %55 by %c255_i32 dim 1 : vector<8x256xf32>, i32 -> vector<8x256xf32>
    %111 = vector.broadcast %74 : vector<1x256xf32> to vector<8x256xf32>
    %112 = arith.mulf %110, %111 : vector<8x256xf32>
    %113 = vector.extract_strided_slice %1 {offsets = [0, 21], sizes = [8, 1], strides = [1, 1]} : vector<8x28xf32> to vector<8x1xf32>
    %114 = vector.broadcast %113 : vector<8x1xf32> to vector<8x256xf32>
    %115 = arith.mulf %112, %114 : vector<8x256xf32>
    %116 = arith.addf %109, %115 : vector<8x256xf32>
    %c241_i32 = arith.constant 241 : i32
    %117 = tpu.dynamic_rotate %55 by %c241_i32 dim 1 : vector<8x256xf32>, i32 -> vector<8x256xf32>
    %118 = vector.broadcast %77 : vector<1x256xf32> to vector<8x256xf32>
    %119 = arith.mulf %117, %118 : vector<8x256xf32>
    %120 = vector.extract_strided_slice %1 {offsets = [0, 22], sizes = [8, 1], strides = [1, 1]} : vector<8x28xf32> to vector<8x1xf32>
    %121 = vector.broadcast %120 : vector<8x1xf32> to vector<8x256xf32>
    %122 = arith.mulf %119, %121 : vector<8x256xf32>
    %123 = arith.addf %116, %122 : vector<8x256xf32>
    %c240_i32_6 = arith.constant 240 : i32
    %124 = tpu.dynamic_rotate %55 by %c240_i32_6 dim 1 : vector<8x256xf32>, i32 -> vector<8x256xf32>
    %125 = vector.broadcast %66 : vector<1x256xf32> to vector<8x256xf32>
    %126 = arith.mulf %124, %125 : vector<8x256xf32>
    %127 = vector.extract_strided_slice %1 {offsets = [0, 23], sizes = [8, 1], strides = [1, 1]} : vector<8x28xf32> to vector<8x1xf32>
    %128 = vector.broadcast %127 : vector<8x1xf32> to vector<8x256xf32>
    %129 = arith.mulf %126, %128 : vector<8x256xf32>
    %130 = arith.addf %123, %129 : vector<8x256xf32>
    %c239_i32 = arith.constant 239 : i32
    %131 = tpu.dynamic_rotate %55 by %c239_i32 dim 1 : vector<8x256xf32>, i32 -> vector<8x256xf32>
    %132 = vector.broadcast %78 : vector<1x256xf32> to vector<8x256xf32>
    %133 = arith.mulf %131, %132 : vector<8x256xf32>
    %134 = vector.extract_strided_slice %1 {offsets = [0, 24], sizes = [8, 1], strides = [1, 1]} : vector<8x28xf32> to vector<8x1xf32>
    %135 = vector.broadcast %134 : vector<8x1xf32> to vector<8x256xf32>
    %136 = arith.mulf %133, %135 : vector<8x256xf32>
    %137 = arith.addf %130, %136 : vector<8x256xf32>
    %138 = vector.broadcast %3 : vector<8x1xf32> to vector<8x256xf32>
    %139 = arith.addf %137, %138 : vector<8x256xf32>
    %140 = vector.extract_strided_slice %1 {offsets = [0, 8], sizes = [8, 1], strides = [1, 1]} : vector<8x28xf32> to vector<8x1xf32>
    %141 = vector.extract_strided_slice %139 {offsets = [0, 0], sizes = [1, 256], strides = [1, 1]} : vector<8x256xf32> to vector<1x256xf32>
    %142 = vector.broadcast %140 : vector<8x1xf32> to vector<8x256xf32>
    %143 = vector.broadcast %141 : vector<1x256xf32> to vector<8x256xf32>
    %144 = arith.mulf %142, %143 : vector<8x256xf32>
    %145 = vector.extract_strided_slice %1 {offsets = [0, 9], sizes = [8, 1], strides = [1, 1]} : vector<8x28xf32> to vector<8x1xf32>
    %146 = vector.extract_strided_slice %139 {offsets = [1, 0], sizes = [1, 256], strides = [1, 1]} : vector<8x256xf32> to vector<1x256xf32>
    %147 = vector.broadcast %145 : vector<8x1xf32> to vector<8x256xf32>
    %148 = vector.broadcast %146 : vector<1x256xf32> to vector<8x256xf32>
    %149 = arith.mulf %147, %148 : vector<8x256xf32>
    %150 = arith.addf %144, %149 : vector<8x256xf32>
    %151 = vector.extract_strided_slice %1 {offsets = [0, 10], sizes = [8, 1], strides = [1, 1]} : vector<8x28xf32> to vector<8x1xf32>
    %152 = vector.extract_strided_slice %139 {offsets = [2, 0], sizes = [1, 256], strides = [1, 1]} : vector<8x256xf32> to vector<1x256xf32>
    %153 = vector.broadcast %151 : vector<8x1xf32> to vector<8x256xf32>
    %154 = vector.broadcast %152 : vector<1x256xf32> to vector<8x256xf32>
    %155 = arith.mulf %153, %154 : vector<8x256xf32>
    %156 = arith.addf %150, %155 : vector<8x256xf32>
    %157 = vector.extract_strided_slice %1 {offsets = [0, 11], sizes = [8, 1], strides = [1, 1]} : vector<8x28xf32> to vector<8x1xf32>
    %158 = vector.extract_strided_slice %139 {offsets = [3, 0], sizes = [1, 256], strides = [1, 1]} : vector<8x256xf32> to vector<1x256xf32>
    %159 = vector.broadcast %157 : vector<8x1xf32> to vector<8x256xf32>
    %160 = vector.broadcast %158 : vector<1x256xf32> to vector<8x256xf32>
    %161 = arith.mulf %159, %160 : vector<8x256xf32>
    %162 = arith.addf %156, %161 : vector<8x256xf32>
    %163 = vector.extract_strided_slice %1 {offsets = [0, 12], sizes = [8, 1], strides = [1, 1]} : vector<8x28xf32> to vector<8x1xf32>
    %164 = vector.extract_strided_slice %139 {offsets = [4, 0], sizes = [1, 256], strides = [1, 1]} : vector<8x256xf32> to vector<1x256xf32>
    %165 = vector.broadcast %163 : vector<8x1xf32> to vector<8x256xf32>
    %166 = vector.broadcast %164 : vector<1x256xf32> to vector<8x256xf32>
    %167 = arith.mulf %165, %166 : vector<8x256xf32>
    %168 = arith.addf %162, %167 : vector<8x256xf32>
    %169 = vector.extract_strided_slice %1 {offsets = [0, 13], sizes = [8, 1], strides = [1, 1]} : vector<8x28xf32> to vector<8x1xf32>
    %170 = vector.extract_strided_slice %139 {offsets = [5, 0], sizes = [1, 256], strides = [1, 1]} : vector<8x256xf32> to vector<1x256xf32>
    %171 = vector.broadcast %169 : vector<8x1xf32> to vector<8x256xf32>
    %172 = vector.broadcast %170 : vector<1x256xf32> to vector<8x256xf32>
    %173 = arith.mulf %171, %172 : vector<8x256xf32>
    %174 = arith.addf %168, %173 : vector<8x256xf32>
    %175 = vector.extract_strided_slice %1 {offsets = [0, 14], sizes = [8, 1], strides = [1, 1]} : vector<8x28xf32> to vector<8x1xf32>
    %176 = vector.extract_strided_slice %139 {offsets = [6, 0], sizes = [1, 256], strides = [1, 1]} : vector<8x256xf32> to vector<1x256xf32>
    %177 = vector.broadcast %175 : vector<8x1xf32> to vector<8x256xf32>
    %178 = vector.broadcast %176 : vector<1x256xf32> to vector<8x256xf32>
    %179 = arith.mulf %177, %178 : vector<8x256xf32>
    %180 = arith.addf %174, %179 : vector<8x256xf32>
    %181 = vector.extract_strided_slice %1 {offsets = [0, 15], sizes = [8, 1], strides = [1, 1]} : vector<8x28xf32> to vector<8x1xf32>
    %182 = vector.extract_strided_slice %139 {offsets = [7, 0], sizes = [1, 256], strides = [1, 1]} : vector<8x256xf32> to vector<1x256xf32>
    %183 = vector.broadcast %181 : vector<8x1xf32> to vector<8x256xf32>
    %184 = vector.broadcast %182 : vector<1x256xf32> to vector<8x256xf32>
    %185 = arith.mulf %183, %184 : vector<8x256xf32>
    %186 = arith.addf %180, %185 : vector<8x256xf32>
    %187 = vector.broadcast %4 : vector<8x1xf32> to vector<8x256xf32>
    %188 = arith.addf %186, %187 : vector<8x256xf32>
    %cst_7 = arith.constant 0.000000e+00 : f32
    %189 = vector.broadcast %cst_7 : f32 to vector<8x256xf32>
    %190 = arith.maximumf %188, %189 : vector<8x256xf32>
    %191 = vector.extract_strided_slice %0 {offsets = [0, 0], sizes = [1, 256], strides = [1, 1]} : vector<16x256xf32> to vector<1x256xf32>
    %c0_8 = arith.constant 0 : index
    %c0_9 = arith.constant 0 : index
    %192 = vector.load %arg3[%c0_8, %c0_9] : memref<16x256xf32, #tpu.memory_space<vmem>>, vector<1x256xf32>
    tpu.vector_store %arg3[%c0_8, %c0_9], %191 {strides = array<i32>} : memref<16x256xf32, #tpu.memory_space<vmem>>, vector<1x256xf32>,
    %193 = vector.extract_strided_slice %190 {offsets = [0, 0], sizes = [1, 256], strides = [1, 1]} : vector<8x256xf32> to vector<1x256xf32>
    %c1 = arith.constant 1 : index
    %c0_10 = arith.constant 0 : index
    %194 = vector.load %arg3[%c1, %c0_10] : memref<16x256xf32, #tpu.memory_space<vmem>>, vector<1x256xf32>
    tpu.vector_store %arg3[%c1, %c0_10], %193 {strides = array<i32>} : memref<16x256xf32, #tpu.memory_space<vmem>>, vector<1x256xf32>,
    %195 = vector.extract_strided_slice %0 {offsets = [1, 0], sizes = [1, 256], strides = [1, 1]} : vector<16x256xf32> to vector<1x256xf32>
    %c2 = arith.constant 2 : index
    %c0_11 = arith.constant 0 : index
    %196 = vector.load %arg3[%c2, %c0_11] : memref<16x256xf32, #tpu.memory_space<vmem>>, vector<1x256xf32>
    tpu.vector_store %arg3[%c2, %c0_11], %195 {strides = array<i32>} : memref<16x256xf32, #tpu.memory_space<vmem>>, vector<1x256xf32>,
    %197 = vector.extract_strided_slice %190 {offsets = [1, 0], sizes = [1, 256], strides = [1, 1]} : vector<8x256xf32> to vector<1x256xf32>
    %c3 = arith.constant 3 : index
    %c0_12 = arith.constant 0 : index
    %198 = vector.load %arg3[%c3, %c0_12] : memref<16x256xf32, #tpu.memory_space<vmem>>, vector<1x256xf32>
    tpu.vector_store %arg3[%c3, %c0_12], %197 {strides = array<i32>} : memref<16x256xf32, #tpu.memory_space<vmem>>, vector<1x256xf32>,
    %199 = vector.extract_strided_slice %0 {offsets = [2, 0], sizes = [1, 256], strides = [1, 1]} : vector<16x256xf32> to vector<1x256xf32>
    %c4 = arith.constant 4 : index
    %c0_13 = arith.constant 0 : index
    %200 = vector.load %arg3[%c4, %c0_13] : memref<16x256xf32, #tpu.memory_space<vmem>>, vector<1x256xf32>
    tpu.vector_store %arg3[%c4, %c0_13], %199 {strides = array<i32>} : memref<16x256xf32, #tpu.memory_space<vmem>>, vector<1x256xf32>,
    %201 = vector.extract_strided_slice %190 {offsets = [2, 0], sizes = [1, 256], strides = [1, 1]} : vector<8x256xf32> to vector<1x256xf32>
    %c5 = arith.constant 5 : index
    %c0_14 = arith.constant 0 : index
    %202 = vector.load %arg3[%c5, %c0_14] : memref<16x256xf32, #tpu.memory_space<vmem>>, vector<1x256xf32>
    tpu.vector_store %arg3[%c5, %c0_14], %201 {strides = array<i32>} : memref<16x256xf32, #tpu.memory_space<vmem>>, vector<1x256xf32>,
    %203 = vector.extract_strided_slice %0 {offsets = [3, 0], sizes = [1, 256], strides = [1, 1]} : vector<16x256xf32> to vector<1x256xf32>
    %c6 = arith.constant 6 : index
    %c0_15 = arith.constant 0 : index
    %204 = vector.load %arg3[%c6, %c0_15] : memref<16x256xf32, #tpu.memory_space<vmem>>, vector<1x256xf32>
    tpu.vector_store %arg3[%c6, %c0_15], %203 {strides = array<i32>} : memref<16x256xf32, #tpu.memory_space<vmem>>, vector<1x256xf32>,
    %205 = vector.extract_strided_slice %190 {offsets = [3, 0], sizes = [1, 256], strides = [1, 1]} : vector<8x256xf32> to vector<1x256xf32>
    %c7 = arith.constant 7 : index
    %c0_16 = arith.constant 0 : index
    %206 = vector.load %arg3[%c7, %c0_16] : memref<16x256xf32, #tpu.memory_space<vmem>>, vector<1x256xf32>
    tpu.vector_store %arg3[%c7, %c0_16], %205 {strides = array<i32>} : memref<16x256xf32, #tpu.memory_space<vmem>>, vector<1x256xf32>,
    %207 = vector.extract_strided_slice %0 {offsets = [8, 0], sizes = [1, 256], strides = [1, 1]} : vector<16x256xf32> to vector<1x256xf32>
    %c8 = arith.constant 8 : index
    %c0_17 = arith.constant 0 : index
    %208 = vector.load %arg3[%c8, %c0_17] : memref<16x256xf32, #tpu.memory_space<vmem>>, vector<1x256xf32>
    tpu.vector_store %arg3[%c8, %c0_17], %207 {strides = array<i32>} : memref<16x256xf32, #tpu.memory_space<vmem>>, vector<1x256xf32>,
    %209 = vector.extract_strided_slice %190 {offsets = [4, 0], sizes = [1, 256], strides = [1, 1]} : vector<8x256xf32> to vector<1x256xf32>
    %c9 = arith.constant 9 : index
    %c0_18 = arith.constant 0 : index
    %210 = vector.load %arg3[%c9, %c0_18] : memref<16x256xf32, #tpu.memory_space<vmem>>, vector<1x256xf32>
    tpu.vector_store %arg3[%c9, %c0_18], %209 {strides = array<i32>} : memref<16x256xf32, #tpu.memory_space<vmem>>, vector<1x256xf32>,
    %211 = vector.extract_strided_slice %0 {offsets = [9, 0], sizes = [1, 256], strides = [1, 1]} : vector<16x256xf32> to vector<1x256xf32>
    %c10 = arith.constant 10 : index
    %c0_19 = arith.constant 0 : index
    %212 = vector.load %arg3[%c10, %c0_19] : memref<16x256xf32, #tpu.memory_space<vmem>>, vector<1x256xf32>
    tpu.vector_store %arg3[%c10, %c0_19], %211 {strides = array<i32>} : memref<16x256xf32, #tpu.memory_space<vmem>>, vector<1x256xf32>,
    %213 = vector.extract_strided_slice %190 {offsets = [5, 0], sizes = [1, 256], strides = [1, 1]} : vector<8x256xf32> to vector<1x256xf32>
    %c11 = arith.constant 11 : index
    %c0_20 = arith.constant 0 : index
    %214 = vector.load %arg3[%c11, %c0_20] : memref<16x256xf32, #tpu.memory_space<vmem>>, vector<1x256xf32>
    tpu.vector_store %arg3[%c11, %c0_20], %213 {strides = array<i32>} : memref<16x256xf32, #tpu.memory_space<vmem>>, vector<1x256xf32>,
    %215 = vector.extract_strided_slice %0 {offsets = [10, 0], sizes = [1, 256], strides = [1, 1]} : vector<16x256xf32> to vector<1x256xf32>
    %c12 = arith.constant 12 : index
    %c0_21 = arith.constant 0 : index
    %216 = vector.load %arg3[%c12, %c0_21] : memref<16x256xf32, #tpu.memory_space<vmem>>, vector<1x256xf32>
    tpu.vector_store %arg3[%c12, %c0_21], %215 {strides = array<i32>} : memref<16x256xf32, #tpu.memory_space<vmem>>, vector<1x256xf32>,
    %217 = vector.extract_strided_slice %190 {offsets = [6, 0], sizes = [1, 256], strides = [1, 1]} : vector<8x256xf32> to vector<1x256xf32>
    %c13 = arith.constant 13 : index
    %c0_22 = arith.constant 0 : index
    %218 = vector.load %arg3[%c13, %c0_22] : memref<16x256xf32, #tpu.memory_space<vmem>>, vector<1x256xf32>
    tpu.vector_store %arg3[%c13, %c0_22], %217 {strides = array<i32>} : memref<16x256xf32, #tpu.memory_space<vmem>>, vector<1x256xf32>,
    %219 = vector.extract_strided_slice %0 {offsets = [11, 0], sizes = [1, 256], strides = [1, 1]} : vector<16x256xf32> to vector<1x256xf32>
    %c14 = arith.constant 14 : index
    %c0_23 = arith.constant 0 : index
    %220 = vector.load %arg3[%c14, %c0_23] : memref<16x256xf32, #tpu.memory_space<vmem>>, vector<1x256xf32>
    tpu.vector_store %arg3[%c14, %c0_23], %219 {strides = array<i32>} : memref<16x256xf32, #tpu.memory_space<vmem>>, vector<1x256xf32>,
    %221 = vector.extract_strided_slice %190 {offsets = [7, 0], sizes = [1, 256], strides = [1, 1]} : vector<8x256xf32> to vector<1x256xf32>
    %c15 = arith.constant 15 : index
    %c0_24 = arith.constant 0 : index
    %222 = vector.load %arg3[%c15, %c0_24] : memref<16x256xf32, #tpu.memory_space<vmem>>, vector<1x256xf32>
    tpu.vector_store %arg3[%c15, %c0_24], %221 {strides = array<i32>} : memref<16x256xf32, #tpu.memory_space<vmem>>, vector<1x256xf32>,
    return
  }
  func.func @transform_0(%arg0: i32) -> (i32, i32) {
    %c0_i32 = arith.constant 0 : i32
    %c0_i32_0 = arith.constant 0 : i32
    %c0_i32_1 = arith.constant 0 : i32
    return %c0_i32, %c0_i32_0 : i32, i32
  }
  func.func @transform_1(%arg0: i32) -> (i32, i32) {
    %c0_i32 = arith.constant 0 : i32
    %c0_i32_0 = arith.constant 0 : i32
    %c0_i32_1 = arith.constant 0 : i32
    return %c0_i32, %c0_i32_0 : i32, i32
  }
  func.func @transform_2(%arg0: i32) -> (i32, i32) {
    %c0_i32 = arith.constant 0 : i32
    %c0_i32_0 = arith.constant 0 : i32
    %c0_i32_1 = arith.constant 0 : i32
    return %c0_i32, %c0_i32_0 : i32, i32
  }
}

</mosaic_0001>

<llo_original>
// kernel: inverted_residual_forward.1
$region0: #{inverted_residual_forward.1}
  #allocation0 [shape = 'u32[]', space=smem, size = 0x4, offset = 0x4, fixed_abs, tag = 'smem constant byte address 0x4 - core index']
  #allocation1 [shape = 'u32[144,128]{1,0:T(1,128)}', space=vmem, size = 0x12000, scoped, tag = 'internal scratch']
  %s0 = inlined_call_operand.vmem [shape: f32[16,256], index: 0, kind: input, shape index: {}]
  %s1 = inlined_call_operand.vmem [shape: f32[8,28], index: 1, kind: input, shape index: {}]
  %s2 = inlined_call_operand.vmem [shape: f32[16,256], index: 2, kind: output, shape index: {}]
  %s3 = sld [smem:[#allocation0]]
  $region18: #{inverted_residual_forward.1} parent=0
    _
  %s5 = ssub.s32 1, %s3
  %s6 = scalar_select 0, %s5, %s3
  // Predicated region
  $region2: #{inverted_residual_forward.1} parent=0 // pred_check
    _
  $region3: #{inverted_residual_forward.1} parent=0 // pred_check_branch
    %8 = sbr.rel (0) target = $region5
  $region4: #{inverted_residual_forward.1} parent=0 // pred_region
    _
  $region5: #{inverted_residual_forward.1} parent=0 // pred_fallthru
    _
  // Predicated region
  $region6: #{inverted_residual_forward.1} parent=0 // pred_check
    _
  $region7: #{inverted_residual_forward.1} parent=0 // pred_check_branch
    %10 = sbr.rel (0) target = $region9
  $region8: #{inverted_residual_forward.1} parent=0 // pred_region
    _
  $region9: #{inverted_residual_forward.1} parent=0 // pred_fallthru
    _
  %v11 = vld [vmem:[%s0] sm:$0xff]
  %v12 = vld [vmem:[%s0 + $0x8] sm:$0xff]
  %v13 = vld [vmem:[%s0 + $0x10] sm:$0xff]
  %v14 = vld [vmem:[%s0 + $0x18] sm:$0xff]
  %v15 = vld [vmem:[%s1] sm:$0xff]
  %17 = vset.pattern.permute.xlu0 0
  %18 = vperm.xlu0 %17, %v15
  %v19 = vpop.permute.xlu0 %18
  %v21 = vlaneseq
  %v22 = vshrl.u32 %v21, 7
  %v23 = vsub.s32 4, %v22
  %v24 = vrot.slane %v11, %v23
  %v25 = vlaneseq
  %v26 = vshrl.u32 %v25, 7
  %v27 = vsub.s32 4, %v26
  %v28 = vrot.slane %v12, %v27
  %v29 = vmul.f32 %v19, %v24
  %v30 = vmul.f32 %v19, %v28
  %31 = vset.pattern.permute.xlu0 1
  %32 = vperm.xlu0 %31, %v15
  %v33 = vpop.permute.xlu0 %32
  %v35 = vlaneseq
  %v36 = vshrl.u32 %v35, 7
  %v37 = vsub.s32 5, %v36
  %v38 = vrot.slane %v11, %v37
  %v39 = vlaneseq
  %v40 = vshrl.u32 %v39, 7
  %v41 = vsub.s32 5, %v40
  %v42 = vrot.slane %v12, %v41
  %v43 = vmul.f32 %v33, %v38
  %v44 = vmul.f32 %v33, %v42
  %v45 = vadd.f32 %v29, %v43
  %v46 = vadd.f32 %v30, %v44
  %47 = vset.pattern.permute.xlu0 2
  %48 = vperm.xlu0 %47, %v15
  %v49 = vpop.permute.xlu0 %48
  %v51 = vlaneseq
  %v52 = vshrl.u32 %v51, 7
  %v53 = vsub.s32 6, %v52
  %v54 = vrot.slane %v11, %v53
  %v55 = vlaneseq
  %v56 = vshrl.u32 %v55, 7
  %v57 = vsub.s32 6, %v56
  %v58 = vrot.slane %v12, %v57
  %v59 = vmul.f32 %v49, %v54
  %v60 = vmul.f32 %v49, %v58
  %v61 = vadd.f32 %v45, %v59
  %v62 = vadd.f32 %v46, %v60
  %63 = vset.pattern.permute.xlu0 3
  %64 = vperm.xlu0 %63, %v15
  %v65 = vpop.permute.xlu0 %64
  %v67 = vlaneseq
  %v68 = vshrl.u32 %v67, 7
  %v69 = vsub.s32 7, %v68
  %v70 = vrot.slane %v11, %v69
  %v71 = vlaneseq
  %v72 = vshrl.u32 %v71, 7
  %v73 = vsub.s32 7, %v72
  %v74 = vrot.slane %v12, %v73
  %v75 = vmul.f32 %v65, %v70
  %v76 = vmul.f32 %v65, %v74
  %v77 = vadd.f32 %v61, %v75
  %v78 = vadd.f32 %v62, %v76
  %79 = vset.pattern.permute.xlu0 4
  %80 = vperm.xlu0 %79, %v15
  %v81 = vpop.permute.xlu0 %80
  %v83 = vlaneseq
  %v84 = vshrl.u32 %v83, 7
  %v85 = vsub.s32 4, %v84
  %v86 = vrot.slane %v13, %v85
  %v87 = vlaneseq
  %v88 = vshrl.u32 %v87, 7
  %v89 = vsub.s32 4, %v88
  %v90 = vrot.slane %v14, %v89
  %v91 = vmul.f32 %v81, %v86
  %v92 = vmul.f32 %v81, %v90
  %v93 = vadd.f32 %v77, %v91
  %v94 = vadd.f32 %v78, %v92
  %95 = vset.pattern.permute.xlu0 5
  %96 = vperm.xlu0 %95, %v15
  %v97 = vpop.permute.xlu0 %96
  %v99 = vlaneseq
  %v100 = vshrl.u32 %v99, 7
  %v101 = vsub.s32 5, %v100
  %v102 = vrot.slane %v13, %v101
  %v103 = vlaneseq
  %v104 = vshrl.u32 %v103, 7
  %v105 = vsub.s32 5, %v104
  %v106 = vrot.slane %v14, %v105
  %v107 = vmul.f32 %v97, %v102
  %v108 = vmul.f32 %v97, %v106
  %v109 = vadd.f32 %v93, %v107
  %v110 = vadd.f32 %v94, %v108
  %111 = vset.pattern.permute.xlu0 6
  %112 = vperm.xlu0 %111, %v15
  %v113 = vpop.permute.xlu0 %112
  %v115 = vlaneseq
  %v116 = vshrl.u32 %v115, 7
  %v117 = vsub.s32 6, %v116
  %v118 = vrot.slane %v13, %v117
  %v119 = vlaneseq
  %v120 = vshrl.u32 %v119, 7
  %v121 = vsub.s32 6, %v120
  %v122 = vrot.slane %v14, %v121
  %v123 = vmul.f32 %v113, %v118
  %v124 = vmul.f32 %v113, %v122
  %v125 = vadd.f32 %v109, %v123
  %v126 = vadd.f32 %v110, %v124
  %127 = vset.pattern.permute.xlu0 7
  %128 = vperm.xlu0 %127, %v15
  %v129 = vpop.permute.xlu0 %128
  %v131 = vlaneseq
  %v132 = vshrl.u32 %v131, 7
  %v133 = vsub.s32 7, %v132
  %v134 = vrot.slane %v13, %v133
  %v135 = vlaneseq
  %v136 = vshrl.u32 %v135, 7
  %v137 = vsub.s32 7, %v136
  %v138 = vrot.slane %v14, %v137
  %v139 = vmul.f32 %v129, %v134
  %v140 = vmul.f32 %v129, %v138
  %v141 = vadd.f32 %v125, %v139
  %v142 = vadd.f32 %v126, %v140
  %143 = vset.pattern.permute.xlu0 25
  %144 = vperm.xlu0 %143, %v15
  %v145 = vpop.permute.xlu0 %144
  %v147 = vadd.f32 %v141, %v145
  %v148 = vadd.f32 %v142, %v145
  %v149 = vmax.f32 %v147, 0.0
  %v150 = vmax.f32 %v148, 0.0
  %v151 = vlaneseq
  %v152 = vand.u32 %v151, 127
  %v153 = vadd.s32 %v152, 128
  %v154 = vand.u32 %v152, 15
  %v155 = vand.u32 %v153, 15
  %vm156 = vcmp.ge.s32.totalorder %v152, 16
  %vm157 = vcmp.ge.s32.totalorder %v153, 16
  %v158 = vsel %vm156, 1, 0
  %v159 = vsel %vm157, 1, 0
  %v160 = vcvt.s32.f32 %v158
  %v161 = vcvt.s32.f32 %v159
  %vm162 = vcmp.lt.s32.totalorder %v152, 240
  %vm163 = vcmp.lt.s32.totalorder %v153, 240
  %v164 = vsel %vm162, 1, 0
  %v165 = vsel %vm163, 1, 0
  %v166 = vcvt.s32.f32 %v164
  %v167 = vcvt.s32.f32 %v165
  %vm168 = vcmp.ge.s32.totalorder %v154, 1
  %vm169 = vcmp.ge.s32.totalorder %v155, 1
  %v170 = vsel %vm168, 1, 0
  %v171 = vsel %vm169, 1, 0
  %v172 = vcvt.s32.f32 %v170
  %v173 = vcvt.s32.f32 %v171
  %vm174 = vcmp.le.s32.totalorder %v154, 14
  %vm175 = vcmp.le.s32.totalorder %v155, 14
  %v176 = vsel %vm174, 1, 0
  %v177 = vsel %vm175, 1, 0
  %v178 = vcvt.s32.f32 %v176
  %v179 = vcvt.s32.f32 %v177
  %v180 = vmul.f32 %v160, %v172
  %v181 = vmul.f32 %v161, %v173
  %v182 = vmul.f32 %v160, %v178
  %v183 = vmul.f32 %v161, %v179
  %v184 = vmul.f32 %v166, %v172
  %v185 = vmul.f32 %v167, %v173
  %v186 = vmul.f32 %v166, %v178
  %v187 = vmul.f32 %v167, %v179
  %188 = vset.pattern.permute.xlu0 20
  %189 = vperm.xlu0 %188, %v15
  %v190 = vpop.permute.xlu0 %189
  %v192 = vmul.f32 %v149, %v190
  %v193 = vmul.f32 %v150, %v190
  %194 = vrot.lane.b32.xlu0 %v149, 17
  %v195 = vpop.permute.xlu0 %194
  %196 = vrot.lane.b32.xlu0 %v150, 17
  %v197 = vpop.permute.xlu0 %196
  %vm198 = vcmp.lt.s32.totalorder %v152, 17
  %v199 = vsel %vm198, %v195, %v197
  %v200 = vsel %vm198, %v197, %v195
  %v201 = vmul.f32 %v200, %v180
  %v202 = vmul.f32 %v199, %v181
  %203 = vset.pattern.permute.xlu0 16
  %204 = vperm.xlu0 %203, %v15
  %v205 = vpop.permute.xlu0 %204
  %v207 = vmul.f32 %v201, %v205
  %v208 = vmul.f32 %v202, %v205
  %v209 = vadd.f32 %v192, %v207
  %v210 = vadd.f32 %v193, %v208
  %211 = vrot.lane.b32.xlu0 %v149, 16
  %v212 = vpop.permute.xlu0 %211
  %213 = vrot.lane.b32.xlu0 %v150, 16
  %v214 = vpop.permute.xlu0 %213
  %vm215 = vcmp.lt.s32.totalorder %v152, 16
  %v216 = vsel %vm215, %v212, %v214
  %v217 = vsel %vm215, %v214, %v212
  %v218 = vmul.f32 %v217, %v160
  %v219 = vmul.f32 %v216, %v161
  %220 = vset.pattern.permute.xlu0 17
  %221 = vperm.xlu0 %220, %v15
  %v222 = vpop.permute.xlu0 %221
  %v224 = vmul.f32 %v218, %v222
  %v225 = vmul.f32 %v219, %v222
  %v226 = vadd.f32 %v209, %v224
  %v227 = vadd.f32 %v210, %v225
  %228 = vrot.lane.b32.xlu0 %v149, 15
  %v229 = vpop.permute.xlu0 %228
  %230 = vrot.lane.b32.xlu0 %v150, 15
  %v231 = vpop.permute.xlu0 %230
  %vm232 = vcmp.lt.s32.totalorder %v152, 15
  %v233 = vsel %vm232, %v229, %v231
  %v234 = vsel %vm232, %v231, %v229
  %v235 = vmul.f32 %v234, %v182
  %v236 = vmul.f32 %v233, %v183
  %237 = vset.pattern.permute.xlu0 18
  %238 = vperm.xlu0 %237, %v15
  %v239 = vpop.permute.xlu0 %238
  %v241 = vmul.f32 %v235, %v239
  %v242 = vmul.f32 %v236, %v239
  %v243 = vadd.f32 %v226, %v241
  %v244 = vadd.f32 %v227, %v242
  %245 = vrot.lane.b32.xlu0 %v149, 1
  %v246 = vpop.permute.xlu0 %245
  %247 = vrot.lane.b32.xlu0 %v150, 1
  %v248 = vpop.permute.xlu0 %247
  %vm249 = vcmp.lt.s32.totalorder %v152, 1
  %v250 = vsel %vm249, %v246, %v248
  %v251 = vsel %vm249, %v248, %v246
  %v252 = vmul.f32 %v251, %v172
  %v253 = vmul.f32 %v250, %v173
  %254 = vset.pattern.permute.xlu0 19
  %255 = vperm.xlu0 %254, %v15
  %v256 = vpop.permute.xlu0 %255
  %v258 = vmul.f32 %v252, %v256
  %v259 = vmul.f32 %v253, %v256
  %v260 = vadd.f32 %v243, %v258
  %v261 = vadd.f32 %v244, %v259
  %262 = vrot.lane.b32.xlu0 %v149, 127
  %v263 = vpop.permute.xlu0 %262
  %264 = vrot.lane.b32.xlu0 %v150, 127
  %v265 = vpop.permute.xlu0 %264
  %vm266 = vcmp.lt.s32.totalorder %v152, 127
  %v267 = vsel %vm266, %v263, %v265
  %v268 = vsel %vm266, %v265, %v263
  %v269 = vmul.f32 %v267, %v178
  %v270 = vmul.f32 %v268, %v179
  %271 = vset.pattern.permute.xlu0 21
  %272 = vperm.xlu0 %271, %v15
  %v273 = vpop.permute.xlu0 %272
  %v275 = vmul.f32 %v269, %v273
  %v276 = vmul.f32 %v270, %v273
  %v277 = vadd.f32 %v260, %v275
  %v278 = vadd.f32 %v261, %v276
  %279 = vrot.lane.b32.xlu0 %v149, 113
  %v280 = vpop.permute.xlu0 %279
  %281 = vrot.lane.b32.xlu0 %v150, 113
  %v282 = vpop.permute.xlu0 %281
  %vm283 = vcmp.lt.s32.totalorder %v152, 113
  %v284 = vsel %vm283, %v280, %v282
  %v285 = vsel %vm283, %v282, %v280
  %v286 = vmul.f32 %v284, %v184
  %v287 = vmul.f32 %v285, %v185
  %288 = vset.pattern.permute.xlu0 22
  %289 = vperm.xlu0 %288, %v15
  %v290 = vpop.permute.xlu0 %289
  %v292 = vmul.f32 %v286, %v290
  %v293 = vmul.f32 %v287, %v290
  %v294 = vadd.f32 %v277, %v292
  %v295 = vadd.f32 %v278, %v293
  %296 = vrot.lane.b32.xlu0 %v149, 112
  %v297 = vpop.permute.xlu0 %296
  %298 = vrot.lane.b32.xlu0 %v150, 112
  %v299 = vpop.permute.xlu0 %298
  %vm300 = vcmp.lt.s32.totalorder %v152, 112
  %v301 = vsel %vm300, %v297, %v299
  %v302 = vsel %vm300, %v299, %v297
  %v303 = vmul.f32 %v301, %v166
  %v304 = vmul.f32 %v302, %v167
  %305 = vset.pattern.permute.xlu0 23
  %306 = vperm.xlu0 %305, %v15
  %v307 = vpop.permute.xlu0 %306
  %v309 = vmul.f32 %v303, %v307
  %v310 = vmul.f32 %v304, %v307
  %v311 = vadd.f32 %v294, %v309
  %v312 = vadd.f32 %v295, %v310
  %313 = vrot.lane.b32.xlu0 %v149, 111
  %v314 = vpop.permute.xlu0 %313
  %315 = vrot.lane.b32.xlu0 %v150, 111
  %v316 = vpop.permute.xlu0 %315
  %vm317 = vcmp.lt.s32.totalorder %v152, 111
  %v318 = vsel %vm317, %v314, %v316
  %v319 = vsel %vm317, %v316, %v314
  %v320 = vmul.f32 %v318, %v186
  %v321 = vmul.f32 %v319, %v187
  %322 = vset.pattern.permute.xlu0 24
  %323 = vperm.xlu0 %322, %v15
  %v324 = vpop.permute.xlu0 %323
  %v326 = vmul.f32 %v320, %v324
  %v327 = vmul.f32 %v321, %v324
  %v328 = vadd.f32 %v311, %v326
  %v329 = vadd.f32 %v312, %v327
  %330 = vset.pattern.permute.xlu0 26
  %331 = vperm.xlu0 %330, %v15
  %v332 = vpop.permute.xlu0 %331
  %v334 = vadd.f32 %v328, %v332
  %v335 = vadd.f32 %v329, %v332
  %336 = vset.pattern.permute.xlu0 8
  %337 = vperm.xlu0 %336, %v15
  %v338 = vpop.permute.xlu0 %337
  %v340 = vlaneseq
  %v341 = vshrl.u32 %v340, 7
  %v342 = vsub.s32 0, %v341
  %v343 = vrot.slane %v334, %v342
  %v344 = vlaneseq
  %v345 = vshrl.u32 %v344, 7
  %v346 = vsub.s32 0, %v345
  %v347 = vrot.slane %v335, %v346
  %v348 = vmul.f32 %v338, %v343
  %v349 = vmul.f32 %v338, %v347
  %350 = vset.pattern.permute.xlu0 9
  %351 = vperm.xlu0 %350, %v15
  %v352 = vpop.permute.xlu0 %351
  %v354 = vlaneseq
  %v355 = vshrl.u32 %v354, 7
  %v356 = vsub.s32 1, %v355
  %v357 = vrot.slane %v334, %v356
  %v358 = vlaneseq
  %v359 = vshrl.u32 %v358, 7
  %v360 = vsub.s32 1, %v359
  %v361 = vrot.slane %v335, %v360
  %v362 = vmul.f32 %v352, %v357
  %v363 = vmul.f32 %v352, %v361
  %v364 = vadd.f32 %v348, %v362
  %v365 = vadd.f32 %v349, %v363
  %366 = vset.pattern.permute.xlu0 10
  %367 = vperm.xlu0 %366, %v15
  %v368 = vpop.permute.xlu0 %367
  %v370 = vlaneseq
  %v371 = vshrl.u32 %v370, 7
  %v372 = vsub.s32 2, %v371
  %v373 = vrot.slane %v334, %v372
  %v374 = vlaneseq
  %v375 = vshrl.u32 %v374, 7
  %v376 = vsub.s32 2, %v375
  %v377 = vrot.slane %v335, %v376
  %v378 = vmul.f32 %v368, %v373
  %v379 = vmul.f32 %v368, %v377
  %v380 = vadd.f32 %v364, %v378
  %v381 = vadd.f32 %v365, %v379
  %382 = vset.pattern.permute.xlu0 11
  %383 = vperm.xlu0 %382, %v15
  %v384 = vpop.permute.xlu0 %383
  %v386 = vlaneseq
  %v387 = vshrl.u32 %v386, 7
  %v388 = vsub.s32 3, %v387
  %v389 = vrot.slane %v334, %v388
  %v390 = vlaneseq
  %v391 = vshrl.u32 %v390, 7
  %v392 = vsub.s32 3, %v391
  %v393 = vrot.slane %v335, %v392
  %v394 = vmul.f32 %v384, %v389
  %v395 = vmul.f32 %v384, %v393
  %v396 = vadd.f32 %v380, %v394
  %v397 = vadd.f32 %v381, %v395
  %398 = vset.pattern.permute.xlu0 12
  %399 = vperm.xlu0 %398, %v15
  %v400 = vpop.permute.xlu0 %399
  %v402 = vlaneseq
  %v403 = vshrl.u32 %v402, 7
  %v404 = vsub.s32 4, %v403
  %v405 = vrot.slane %v334, %v404
  %v406 = vlaneseq
  %v407 = vshrl.u32 %v406, 7
  %v408 = vsub.s32 4, %v407
  %v409 = vrot.slane %v335, %v408
  %v410 = vmul.f32 %v400, %v405
  %v411 = vmul.f32 %v400, %v409
  %v412 = vadd.f32 %v396, %v410
  %v413 = vadd.f32 %v397, %v411
  %414 = vset.pattern.permute.xlu0 13
  %415 = vperm.xlu0 %414, %v15
  %v416 = vpop.permute.xlu0 %415
  %v418 = vlaneseq
  %v419 = vshrl.u32 %v418, 7
  %v420 = vsub.s32 5, %v419
  %v421 = vrot.slane %v334, %v420
  %v422 = vlaneseq
  %v423 = vshrl.u32 %v422, 7
  %v424 = vsub.s32 5, %v423
  %v425 = vrot.slane %v335, %v424
  %v426 = vmul.f32 %v416, %v421
  %v427 = vmul.f32 %v416, %v425
  %v428 = vadd.f32 %v412, %v426
  %v429 = vadd.f32 %v413, %v427
  %430 = vset.pattern.permute.xlu0 14
  %431 = vperm.xlu0 %430, %v15
  %v432 = vpop.permute.xlu0 %431
  %v434 = vlaneseq
  %v435 = vshrl.u32 %v434, 7
  %v436 = vsub.s32 6, %v435
  %v437 = vrot.slane %v334, %v436
  %v438 = vlaneseq
  %v439 = vshrl.u32 %v438, 7
  %v440 = vsub.s32 6, %v439
  %v441 = vrot.slane %v335, %v440
  %v442 = vmul.f32 %v432, %v437
  %v443 = vmul.f32 %v432, %v441
  %v444 = vadd.f32 %v428, %v442
  %v445 = vadd.f32 %v429, %v443
  %446 = vset.pattern.permute.xlu0 15
  %447 = vperm.xlu0 %446, %v15
  %v448 = vpop.permute.xlu0 %447
  %v450 = vlaneseq
  %v451 = vshrl.u32 %v450, 7
  %v452 = vsub.s32 7, %v451
  %v453 = vrot.slane %v334, %v452
  %v454 = vlaneseq
  %v455 = vshrl.u32 %v454, 7
  %v456 = vsub.s32 7, %v455
  %v457 = vrot.slane %v335, %v456
  %v458 = vmul.f32 %v448, %v453
  %v459 = vmul.f32 %v448, %v457
  %v460 = vadd.f32 %v444, %v458
  %v461 = vadd.f32 %v445, %v459
  %462 = vset.pattern.permute.xlu0 27
  %463 = vperm.xlu0 %462, %v15
  %v464 = vpop.permute.xlu0 %463
  %v466 = vadd.f32 %v460, %v464
  %v467 = vadd.f32 %v461, %v464
  %v468 = vmax.f32 %v466, 0.0
  %v469 = vmax.f32 %v467, 0.0
  %v472 = vcombine.low %v11, %v12
  %v474 = vunpack.c.l.s4 1966171168
  %v475 = vunpack.c.0.s8 %v474
  %v476 = vlaneseq
  %v477 = vshrl.u32 %v476, 7
  %v478 = vsub.s32 %v475, %v477
  %v479 = vrot.slane %v472, %v478
  %v481 = vunpack.c.l.s4 1966171168
  %v482 = vunpack.c.0.s8 %v481
  %v483 = vlaneseq
  %v484 = vshrl.u32 %v483, 7
  %v485 = vsub.s32 %v482, %v484
  %v486 = vrot.slane %v479, %v485
  %v488 = vlaneseq
  %vm489 = vcmp.ge.s32.totalorder %v488, 0
  %vm490 = vcmp.lt.s32.totalorder %v488, 256
  %vm491 = vmand %vm489, %vm490
  %492 = vst.msk [vmem:[%s2] ss:$8 sm:$0x3] %vm491, %v486
  %493 = vst.msk [vmem:[%s2] ss:$8 sm:$0x0] %vm491, %v486
  %v496 = vcombine.low %v468, %v469
  %v498 = vunpack.c.l.s4 1966171168
  %v499 = vunpack.c.0.s8 %v498
  %v500 = vlaneseq
  %v501 = vshrl.u32 %v500, 7
  %v502 = vsub.s32 %v499, %v501
  %v503 = vrot.slane %v496, %v502
  %v505 = vunpack.c.l.s4 1966171168
  %v506 = vunpack.c.0.s8 %v505
  %v507 = vlaneseq
  %v508 = vshrl.u32 %v507, 7
  %v509 = vsub.s32 %v506, %v508
  %v510 = vrot.slane %v503, %v509
  %s512 = scalar_lea.vmem %s2, 1
  %513 = vst.msk [vmem:[%s512] ss:$8 sm:$0x3] %vm491, %v510
  %514 = vst.msk [vmem:[%s512] ss:$8 sm:$0x0] %vm491, %v510
  %v515 = vcombine.high %v479, %v479
  %v517 = vunpack.c.l.s4 1966171168
  %v518 = vunpack.c.0.s8 %v517
  %v519 = vlaneseq
  %v520 = vshrl.u32 %v519, 7
  %v521 = vsub.s32 %v518, %v520
  %v522 = vrot.slane %v515, %v521
  %s524 = scalar_lea.vmem %s2, 2
  %525 = vst.msk [vmem:[%s524] ss:$8 sm:$0x3] %vm491, %v522
  %526 = vst.msk [vmem:[%s524] ss:$8 sm:$0x0] %vm491, %v522
  %v527 = vcombine.high %v503, %v503
  %v529 = vunpack.c.l.s4 1966171168
  %v530 = vunpack.c.0.s8 %v529
  %v531 = vlaneseq
  %v532 = vshrl.u32 %v531, 7
  %v533 = vsub.s32 %v530, %v532
  %v534 = vrot.slane %v527, %v533
  %s536 = scalar_lea.vmem %s2, 3
  %537 = vst.msk [vmem:[%s536] ss:$8 sm:$0x3] %vm491, %v534
  %538 = vst.msk [vmem:[%s536] ss:$8 sm:$0x0] %vm491, %v534
  %v539 = vcombine.high %v486, %v486
  %s541 = scalar_lea.vmem %s2, 4
  %542 = vst.msk [vmem:[%s541] ss:$8 sm:$0x3] %vm491, %v539
  %543 = vst.msk [vmem:[%s541] ss:$8 sm:$0x0] %vm491, %v539
  %v544 = vcombine.high %v510, %v510
  %s546 = scalar_lea.vmem %s2, 5
  %547 = vst.msk [vmem:[%s546] ss:$8 sm:$0x3] %vm491, %v544
  %548 = vst.msk [vmem:[%s546] ss:$8 sm:$0x0] %vm491, %v544
  %v549 = vcombine.high %v522, %v522
  %s551 = scalar_lea.vmem %s2, 6
  %552 = vst.msk [vmem:[%s551] ss:$8 sm:$0x3] %vm491, %v549
  %553 = vst.msk [vmem:[%s551] ss:$8 sm:$0x0] %vm491, %v549
  %v554 = vcombine.high %v534, %v534
  %s556 = scalar_lea.vmem %s2, 7
  %557 = vst.msk [vmem:[%s556] ss:$8 sm:$0x3] %vm491, %v554
  %558 = vst.msk [vmem:[%s556] ss:$8 sm:$0x0] %vm491, %v554
  %v561 = vcombine.low %v13, %v14
  %v563 = vunpack.c.l.s4 1966171168
  %v564 = vunpack.c.0.s8 %v563
  %v565 = vlaneseq
  %v566 = vshrl.u32 %v565, 7
  %v567 = vsub.s32 %v564, %v566
  %v568 = vrot.slane %v561, %v567
  %v570 = vunpack.c.l.s4 1966171168
  %v571 = vunpack.c.0.s8 %v570
  %v572 = vlaneseq
  %v573 = vshrl.u32 %v572, 7
  %v574 = vsub.s32 %v571, %v573
  %v575 = vrot.slane %v568, %v574
  %s577 = scalar_lea.vmem %s2, 16
  %578 = vst.msk [vmem:[%s577] ss:$8 sm:$0x3] %vm491, %v575
  %579 = vst.msk [vmem:[%s577] ss:$8 sm:$0x0] %vm491, %v575
  %v580 = vcombine.high %v468, %v469
  %v582 = vunpack.c.l.s4 1966171168
  %v583 = vunpack.c.0.s8 %v582
  %v584 = vlaneseq
  %v585 = vshrl.u32 %v584, 7
  %v586 = vsub.s32 %v583, %v585
  %v587 = vrot.slane %v580, %v586
  %v589 = vunpack.c.l.s4 1966171168
  %v590 = vunpack.c.0.s8 %v589
  %v591 = vlaneseq
  %v592 = vshrl.u32 %v591, 7
  %v593 = vsub.s32 %v590, %v592
  %v594 = vrot.slane %v587, %v593
  %s596 = scalar_lea.vmem %s2, 17
  %597 = vst.msk [vmem:[%s596] ss:$8 sm:$0x3] %vm491, %v594
  %598 = vst.msk [vmem:[%s596] ss:$8 sm:$0x0] %vm491, %v594
  %v599 = vcombine.high %v568, %v568
  %v601 = vunpack.c.l.s4 1966171168
  %v602 = vunpack.c.0.s8 %v601
  %v603 = vlaneseq
  %v604 = vshrl.u32 %v603, 7
  %v605 = vsub.s32 %v602, %v604
  %v606 = vrot.slane %v599, %v605
  %s608 = scalar_lea.vmem %s2, 18
  %609 = vst.msk [vmem:[%s608] ss:$8 sm:$0x3] %vm491, %v606
  %610 = vst.msk [vmem:[%s608] ss:$8 sm:$0x0] %vm491, %v606
  %v611 = vcombine.high %v587, %v587
  %v613 = vunpack.c.l.s4 1966171168
  %v614 = vunpack.c.0.s8 %v613
  %v615 = vlaneseq
  %v616 = vshrl.u32 %v615, 7
  %v617 = vsub.s32 %v614, %v616
  %v618 = vrot.slane %v611, %v617
  %s620 = scalar_lea.vmem %s2, 19
  %621 = vst.msk [vmem:[%s620] ss:$8 sm:$0x3] %vm491, %v618
  %622 = vst.msk [vmem:[%s620] ss:$8 sm:$0x0] %vm491, %v618
  %v623 = vcombine.high %v575, %v575
  %s625 = scalar_lea.vmem %s2, 20
  %626 = vst.msk [vmem:[%s625] ss:$8 sm:$0x3] %vm491, %v623
  %627 = vst.msk [vmem:[%s625] ss:$8 sm:$0x0] %vm491, %v623
  %v628 = vcombine.high %v594, %v594
  %s630 = scalar_lea.vmem %s2, 21
  %631 = vst.msk [vmem:[%s630] ss:$8 sm:$0x3] %vm491, %v628
  %632 = vst.msk [vmem:[%s630] ss:$8 sm:$0x0] %vm491, %v628
  %v633 = vcombine.high %v606, %v606
  %s635 = scalar_lea.vmem %s2, 22
  %636 = vst.msk [vmem:[%s635] ss:$8 sm:$0x3] %vm491, %v633
  %637 = vst.msk [vmem:[%s635] ss:$8 sm:$0x0] %vm491, %v633
  %v638 = vcombine.high %v618, %v618
  %s640 = scalar_lea.vmem %s2, 23
  %641 = vst.msk [vmem:[%s640] ss:$8 sm:$0x3] %vm491, %v638
  %642 = vst.msk [vmem:[%s640] ss:$8 sm:$0x0] %vm491, %v638
  // Predicated region
  $region10: #{inverted_residual_forward.1} parent=0 // pred_check
    _
  $region11: #{inverted_residual_forward.1} parent=0 // pred_check_branch
    %644 = sbr.rel (0) target = $region13
  $region12: #{inverted_residual_forward.1} parent=0 // pred_region
    _
  $region13: #{inverted_residual_forward.1} parent=0 // pred_fallthru
    _
  // Predicated region
  $region14: #{inverted_residual_forward.1} parent=0 // pred_check
    _
  $region15: #{inverted_residual_forward.1} parent=0 // pred_check_branch
    %646 = sbr.rel (0) target = $region17
  $region16: #{inverted_residual_forward.1} parent=0 // pred_region
    _
  $region17: #{inverted_residual_forward.1} parent=0 // pred_fallthru
    _

</llo_original>
